<compile_context>
chip_gen: v5e
topology: v5e:2x2
jax: 0.10.0
libtpu: 0.0.40
codegen_flags: <defaults>
</compile_context>

<pallas_src>
import functools

import jax
import jax.numpy as jnp
from jax.experimental import pallas as pl
from jax.experimental.pallas import tpu as pltpu


def _gate_kernel_dropout(x_ref, m_ref, w_ref, o_ref):
    # out = x * sigmoid((x * mask) @ W)
    x = x_ref[...]
    xd = x.astype(jnp.float32) * m_ref[...]
    y = jnp.dot(xd, w_ref[...].astype(jnp.float32),
                preferred_element_type=jnp.float32)
    g = jax.nn.sigmoid(y)
    o_ref[...] = (x.astype(jnp.float32) * g).astype(o_ref.dtype)


def _gate_kernel_eval(x_ref, w_ref, o_ref):
    # out = x * sigmoid(x @ W)   (dropout is identity in eval)
    x = x_ref[...]
    y = jnp.dot(x.astype(jnp.float32), w_ref[...].astype(jnp.float32),
                preferred_element_type=jnp.float32)
    g = jax.nn.sigmoid(y)
    o_ref[...] = (x.astype(jnp.float32) * g).astype(o_ref.dtype)


def _pick_row_tile(M, H, bytes_per_elem, target_bytes=2 << 20):
    """Largest divisor of M (preferring multiples of 8) whose (tm, H) block is
    at most ~target_bytes, so the double-buffered pipeline fits comfortably in
    scoped VMEM on all generations (incl. v7x's smaller budget)."""
    cap = max(8, target_bytes // max(1, H * bytes_per_elem))
    if M <= cap:
        return M
    divisors = [t for t in range(1, min(M, cap) + 1) if M % t == 0]
    mult8 = [t for t in divisors if t % 8 == 0]
    if mult8:
        return max(mult8)
    if divisors:
        return max(divisors)
    return M


def gate_forward(x, weight, *, p=0.2, training=True, rng_key=None, row_tile=None):
    """JAX/Pallas equivalent of Gate.forward.

    x:      (..., input_size)
    weight: torch-style nn.Linear weight, shape (input_size, input_size), no bias.
    Returns x * sigmoid(dropout(x) @ weight.T).
    """
    assert 0.0 <= p < 1.0, "dropout p must be in [0, 1)"
    H = x.shape[-1]
    assert weight.shape == (H, H), "Gate is square: (input_size, input_size)"

    orig_shape = x.shape
    x2 = x.reshape(-1, H)                      # lane-dense (M, H)
    M = x2.shape[0]

    w_t = jnp.asarray(weight).T                # (in, out) so y = x @ w_t == x @ W^T

    tm = row_tile if row_tile is not None else _pick_row_tile(
        M, H, jnp.dtype(x.dtype).itemsize)
    assert M % tm == 0, "row tile must divide the flattened row count"
    grid = (M // tm,)

    row_spec = pl.BlockSpec((tm, H), lambda i: (i, 0))
    w_spec = pl.BlockSpec((H, H), lambda i: (0, 0))   # weight stays resident

    compiler_params = pltpu.CompilerParams(
        dimension_semantics=("parallel",),     # row tiles are independent
    )

    use_dropout = training and p > 0.0
    if use_dropout:
        if rng_key is None:
            rng_key = jax.random.PRNGKey(0)
        # Pre-scaled multiplicative dropout mask (standard nn.Dropout semantics).
        keep = jax.random.bernoulli(rng_key, 1.0 - p, shape=x2.shape)
        mask = keep.astype(jnp.float32) * jnp.float32(1.0 / (1.0 - p))
        out2 = pl.pallas_call(
            _gate_kernel_dropout,
            out_shape=jax.ShapeDtypeStruct((M, H), x.dtype),
            grid=grid,
            in_specs=[row_spec, row_spec, w_spec],
            out_specs=row_spec,
            compiler_params=compiler_params,
        )(x2, mask, w_t)
    else:
        out2 = pl.pallas_call(
            _gate_kernel_eval,
            out_shape=jax.ShapeDtypeStruct((M, H), x.dtype),
            grid=grid,
            in_specs=[row_spec, w_spec],
            out_specs=row_spec,
            compiler_params=compiler_params,
        )(x2, w_t)

    return out2.reshape(orig_shape)


if __name__ == "__main__":
    key = jax.random.PRNGKey(0)
    kx, kw, kd = jax.random.split(key, 3)

    batch, seq, input_size = 2, 8, 128
    x = jax.random.normal(kx, (batch, seq, input_size), dtype=jnp.float32)
    # torch-style Linear weight (out_features, in_features), bias=False
    w = jax.random.normal(kw, (input_size, input_size), dtype=jnp.float32) * (
        1.0 / jnp.sqrt(jnp.float32(input_size)))

    # Training path (dropout active).
    y_train = gate_forward(x, w, p=0.2, training=True, rng_key=kd)
    y_train = jax.block_until_ready(y_train)
    assert y_train.shape == x.shape

    # Eval path (dropout is identity) -> check against a pure-JAX reference.
    y_eval = gate_forward(x, w, p=0.2, training=False)
    y_eval = jax.block_until_ready(y_eval)
    ref = x * jax.nn.sigmoid(jnp.einsum("bsh,oh->bso", x, w))
    assert jnp.allclose(y_eval, ref, atol=1e-5, rtol=1e-5), "mismatch vs reference"

    print("KERNEL_OK")
</pallas_src>

<mosaic_0001>
module attributes {stable_mosaic.version = 11 : i64} {
  func.func @_gate_kernel_dropout(%arg0: i32, %arg1: memref<16x128xf32, #tpu.memory_space<vmem>>, %arg2: memref<16x128xf32, #tpu.memory_space<vmem>>, %arg3: memref<128x128xf32, #tpu.memory_space<vmem>>, %arg4: memref<16x128xf32, #tpu.memory_space<vmem>>) attributes {dimension_semantics = [#tpu.dimension_semantics<parallel>], iteration_bounds = array<i64: 1>, scalar_prefetch = 0 : i64, scratch_operands = 0 : i64, tpu.core_type = #tpu.core_type<tc>, window_params = [{transform_indices = @transform_0, window_bounds = array<i64: 16, 128>}, {transform_indices = @transform_1, window_bounds = array<i64: 16, 128>}, {pipeline_mode = #tpu.pipeline_mode<synchronous>, transform_indices = @transform_2, window_bounds = array<i64: 128, 128>}, {transform_indices = @transform_3, window_bounds = array<i64: 16, 128>}]} {
    %c0 = arith.constant 0 : index
    %c0_0 = arith.constant 0 : index
    %0 = vector.load %arg1[%c0, %c0_0] : memref<16x128xf32, #tpu.memory_space<vmem>>, vector<16x128xf32>
    %c0_1 = arith.constant 0 : index
    %c0_2 = arith.constant 0 : index
    %1 = vector.load %arg2[%c0_1, %c0_2] : memref<16x128xf32, #tpu.memory_space<vmem>>, vector<16x128xf32>
    %2 = arith.mulf %0, %1 : vector<16x128xf32>
    %c0_3 = arith.constant 0 : index
    %c0_4 = arith.constant 0 : index
    %3 = vector.load %arg3[%c0_3, %c0_4] : memref<128x128xf32, #tpu.memory_space<vmem>>, vector<128x128xf32>
    %cst = arith.constant dense<0.000000e+00> : vector<16x128xf32>
    %4 = tpu.matmul %2, %3, %cst {dimension_numbers = #tpu.dot_dimension_numbers<[1], [0], [0], [1], [0, 0, 1, 1], [], []>} : vector<16x128xf32>, vector<128x128xf32>, vector<16x128xf32> -> vector<16x128xf32>
    %5 = arith.negf %4 : vector<16x128xf32>
    %6 = math.exp %5 : vector<16x128xf32>
    %cst_5 = arith.constant 1.000000e+00 : f32
    %7 = vector.broadcast %cst_5 : f32 to vector<16x128xf32>
    %8 = arith.addf %7, %6 : vector<16x128xf32>
    %9 = arith.divf %7, %8 : vector<16x128xf32>
    %10 = arith.mulf %0, %9 : vector<16x128xf32>
    %c0_6 = arith.constant 0 : index
    %c0_7 = arith.constant 0 : index
    %11 = vector.load %arg4[%c0_6, %c0_7] : memref<16x128xf32, #tpu.memory_space<vmem>>, vector<16x128xf32>
    tpu.vector_store %arg4[%c0_6, %c0_7], %10 {strides = array<i32>} : memref<16x128xf32, #tpu.memory_space<vmem>>, vector<16x128xf32>,
    return
  }
  func.func @transform_0(%arg0: i32) -> (i32, i32) {
    %c0_i32 = arith.constant 0 : i32
    %c0_i32_0 = arith.constant 0 : i32
    return %arg0, %c0_i32 : i32, i32
  }
  func.func @transform_1(%arg0: i32) -> (i32, i32) {
    %c0_i32 = arith.constant 0 : i32
    %c0_i32_0 = arith.constant 0 : i32
    return %arg0, %c0_i32 : i32, i32
  }
  func.func @transform_2(%arg0: i32) -> (i32, i32) {
    %c0_i32 = arith.constant 0 : i32
    %c0_i32_0 = arith.constant 0 : i32
    %c0_i32_1 = arith.constant 0 : i32
    return %c0_i32, %c0_i32_0 : i32, i32
  }
  func.func @transform_3(%arg0: i32) -> (i32, i32) {
    %c0_i32 = arith.constant 0 : i32
    %c0_i32_0 = arith.constant 0 : i32
    return %arg0, %c0_i32 : i32, i32
  }
}

</mosaic_0001>

<llo_original>
// kernel: tpu_custom_call.1
$region0: #{tpu_custom_call.1}
  #allocation0 [shape = 'u32[]', space=smem, size = 0x4, offset = 0x4, fixed_abs, tag = 'smem constant byte address 0x4 - core index']
  #allocation1 [shape = 'u32[72,128]{1,0:T(1,128)}', space=vmem, size = 0x9000, scoped, tag = 'internal scratch']
  %s0 = inlined_call_operand.hbm [shape: f32[16,128], index: 0, kind: input, shape index: {}]
  %s1 = inlined_call_operand.hbm [shape: f32[16,128], index: 1, kind: input, shape index: {}]
  %s2 = inlined_call_operand.hbm [shape: f32[128,128], index: 2, kind: input, shape index: {}]
  %s3 = inlined_call_operand.hbm [shape: f32[16,128], index: 3, kind: output, shape index: {}]
  %s4 = sld [smem:[#allocation0]]
  $region34: #{tpu_custom_call.1} parent=0
    _
  %s6 = ssub.s32 1, %s4
  %s7 = scalar_select 0, %s6, %s4
  $region1: #{tpu_custom_call.1} parent=0
    #allocation2 [shape = 'u8[8192]{0}', space=vmem, size = 0x2000, scoped, tag = 'input window, operand 0, single buffered']
    #allocation3 [shape = 's32[1]{0}', space=sflag, size = 0x4, scoped, tag = 'scoped memory for tpu_custom_call.1']
    #allocation4 [shape = 's32[1]{0}', space=sflag, size = 0x4, scoped, tag = 'scoped memory for tpu_custom_call.1']
    #allocation5 [shape = 'u8[8192]{0}', space=vmem, size = 0x2000, scoped, tag = 'input window, operand 1, single buffered']
    #allocation6 [shape = 's32[1]{0}', space=sflag, size = 0x4, scoped, tag = 'scoped memory for tpu_custom_call.1']
    #allocation7 [shape = 'u8[65536]{0}', space=vmem, size = 0x10000, scoped, tag = 'input window, operand 2, single buffered']
    #allocation8 [shape = 'u8[8192]{0}', space=vmem, size = 0x2000, scoped, tag = 'output window, operand 0, single buffered']
    %8 = vsyncpa [#allocation3], 0
    %9 = vsyncpa [#allocation6], 0
    %10 = vsyncpa [#allocation4], 0
    // Predicated region
    $region2: #{tpu_custom_call.1} parent=1 // pred_check
      _
    $region3: #{tpu_custom_call.1} parent=1 // pred_check_branch
      %12 = sbr.rel (0) target = $region5
    $region4: #{tpu_custom_call.1} parent=1 // pred_region
      %14 = vsyncadd [#allocation3], 0
      %s15 = sshll.u32 %s0, 4
      %s16 = int_to_ptr.hbm [resolvable:$true] %s15
      %s17 = sshll.u32 [#allocation2], 4
      %s18 = int_to_ptr.vmem [resolvable:$true] %s17
      %23 = dma.hbm_to_vmem [thread:$0]  %s16, 256, %s18, [#allocation3], 128, 128, 8
    $region5: #{tpu_custom_call.1} parent=1 // pred_fallthru
      _
    // Predicated region
    $region6: #{tpu_custom_call.1} parent=1 // pred_check
      _
    $region7: #{tpu_custom_call.1} parent=1 // pred_check_branch
      %25 = sbr.rel (0) target = $region9
    $region8: #{tpu_custom_call.1} parent=1 // pred_region
      %27 = vsyncadd [#allocation6], 0
      %s28 = sshll.u32 %s1, 4
      %s29 = int_to_ptr.hbm [resolvable:$true] %s28
      %s30 = sshll.u32 [#allocation5], 4
      %s31 = int_to_ptr.vmem [resolvable:$true] %s30
      %36 = dma.hbm_to_vmem [thread:$0]  %s29, 256, %s31, [#allocation6], 128, 128, 8
    $region9: #{tpu_custom_call.1} parent=1 // pred_fallthru
      _
    // Predicated region
    $region10: #{tpu_custom_call.1} parent=1 // pred_check
      _
    $region11: #{tpu_custom_call.1} parent=1 // pred_check_branch
      %38 = sbr.rel (0) target = $region13
    $region12: #{tpu_custom_call.1} parent=1 // pred_region
      %40 = vsyncadd [#allocation6], 0
      %s41 = sshll.u32 %s2, 4
      %s42 = int_to_ptr.hbm [resolvable:$true] %s41
      %s43 = sshll.u32 [#allocation7], 4
      %s44 = int_to_ptr.vmem [resolvable:$true] %s43
      %49 = dma.hbm_to_vmem [thread:$0]  %s42, 2048, %s44, [#allocation6], 128, 128, 8
    $region13: #{tpu_custom_call.1} parent=1 // pred_fallthru
      _
    // Predicated region
    $region14: #{tpu_custom_call.1} parent=1 // pred_check
      _
    $region15: #{tpu_custom_call.1} parent=1 // pred_check_branch
      %51 = sbr.rel (0) target = $region17
    $region16: #{tpu_custom_call.1} parent=1 // pred_region
      %53 = dma.done [#allocation3], 256
    $region17: #{tpu_custom_call.1} parent=1 // pred_fallthru
      _
    // Predicated region
    $region18: #{tpu_custom_call.1} parent=1 // pred_check
      _
    $region19: #{tpu_custom_call.1} parent=1 // pred_check_branch
      %55 = sbr.rel (0) target = $region21
    $region20: #{tpu_custom_call.1} parent=1 // pred_region
      %57 = dma.done [#allocation6], 256
    $region21: #{tpu_custom_call.1} parent=1 // pred_fallthru
      _
    // Predicated region
    $region22: #{tpu_custom_call.1} parent=1 // pred_check
      _
    $region23: #{tpu_custom_call.1} parent=1 // pred_check_branch
      %59 = sbr.rel (0) target = $region25
    $region24: #{tpu_custom_call.1} parent=1 // pred_region
      %61 = dma.done [#allocation6], 2048
    $region25: #{tpu_custom_call.1} parent=1 // pred_fallthru
      _
    %v62 = vld [vmem:[#allocation2] sm:$0xff]
    %v63 = vld [vmem:[#allocation2 + $0x8] sm:$0xff]
    %v64 = vld [vmem:[#allocation5] sm:$0xff]
    %v65 = vld [vmem:[#allocation5 + $0x8] sm:$0xff]
    %v66 = vmul.f32 %v62, %v64
    %v67 = vmul.f32 %v63, %v65
    %v68 = vld [vmem:[#allocation7] sm:$0xff]
    %v69 = vld [vmem:[#allocation7 + $0x8] sm:$0xff]
    %v70 = vld [vmem:[#allocation7 + $0x10] sm:$0xff]
    %v71 = vld [vmem:[#allocation7 + $0x18] sm:$0xff]
    %v72 = vld [vmem:[#allocation7 + $0x20] sm:$0xff]
    %v73 = vld [vmem:[#allocation7 + $0x28] sm:$0xff]
    %v74 = vld [vmem:[#allocation7 + $0x30] sm:$0xff]
    %v75 = vld [vmem:[#allocation7 + $0x38] sm:$0xff]
    %v76 = vld [vmem:[#allocation7 + $0x40] sm:$0xff]
    %v77 = vld [vmem:[#allocation7 + $0x48] sm:$0xff]
    %v78 = vld [vmem:[#allocation7 + $0x50] sm:$0xff]
    %v79 = vld [vmem:[#allocation7 + $0x58] sm:$0xff]
    %v80 = vld [vmem:[#allocation7 + $0x60] sm:$0xff]
    %v81 = vld [vmem:[#allocation7 + $0x68] sm:$0xff]
    %v82 = vld [vmem:[#allocation7 + $0x70] sm:$0xff]
    %v83 = vld [vmem:[#allocation7 + $0x78] sm:$0xff]
    %84 = vmatpush.msra.mxu0 %v83
    %85 = vmatpush.msra.mxu0 %v82
    %86 = vmatpush.msra.mxu0 %v81
    %87 = vmatpush.msra.mxu0 %v80
    %88 = vmatpush.msra.mxu0 %v79
    %89 = vmatpush.msra.mxu0 %v78
    %90 = vmatpush.msra.mxu0 %v77
    %91 = vmatpush.msra.mxu0 %v76
    %92 = vmatpush.msra.mxu0 %v75
    %93 = vmatpush.msra.mxu0 %v74
    %94 = vmatpush.msra.mxu0 %v73
    %95 = vmatpush.msra.mxu0 %v72
    %96 = vmatpush.msra.mxu0 %v71
    %97 = vmatpush.msra.mxu0 %v70
    %98 = vmatpush.msra.mxu0 %v69
    %99 = vmatpush.msra.mxu0 %v68
    %100 = vmatmul.f32.gmra.mxu0 %v66
    %v101 = vpop.f32.mrf.mxu0
    %v102 = vadd.f32 0.0, %v101
    %103 = vmatmul.f32.gmra.mxu0 %v67
    %v104 = vpop.f32.mrf.mxu0
    %v105 = vadd.f32 0.0, %v104
    %106 = vdwg.mxu0
    %v107 = vxor.u32 %v102, 2147483648
    %v108 = vxor.u32 %v105, 2147483648
    %v109 = vmul.f32 %v107, 1.442695
    %v110 = vpow.pop %v109
    %v111 = vmul.f32 %v108, 1.442695
    %v112 = vpow.pop %v111
    %v113 = vadd.f32 %v110, 1.0
    %v114 = vadd.f32 %v112, 1.0
    %v115 = vrcp.pop %v113
    %v116 = vmul.f32 %v113, %v115
    %v117 = vsub.f32 1.0, %v116
    %v118 = vmul.f32 %v115, %v117
    %v119 = vadd.f32 %v115, %v118
    %vm120 = vweird.f32 %v113
    %vm121 = vweird.f32 %v115
    %vm122 = vmor %vm120, %vm121
    %v123 = vsel %vm122, %v115, %v119
    %v124 = vand.u32 2147483647, %v113
    %vm125 = vcmp.eq.f32.partialorder %v124, 8.507059e+37
    %v126 = vand.u32 %v113, 2147483648
    %v127 = vor.u32 1.1754944e-38, %v126
    %v128 = vsel %vm125, %v127, %v123
    %v129 = vmul.f32 1.0, %v128
    %v130 = vrcp.pop %v114
    %v131 = vmul.f32 %v114, %v130
    %v132 = vsub.f32 1.0, %v131
    %v133 = vmul.f32 %v130, %v132
    %v134 = vadd.f32 %v130, %v133
    %vm135 = vweird.f32 %v114
    %vm136 = vweird.f32 %v130
    %vm137 = vmor %vm135, %vm136
    %v138 = vsel %vm137, %v130, %v134
    %v139 = vand.u32 2147483647, %v114
    %vm140 = vcmp.eq.f32.partialorder %v139, 8.507059e+37
    %v141 = vand.u32 %v114, 2147483648
    %v142 = vor.u32 1.1754944e-38, %v141
    %v143 = vsel %vm140, %v142, %v138
    %v144 = vmul.f32 1.0, %v143
    %v145 = vmul.f32 %v62, %v129
    %v146 = vmul.f32 %v63, %v144
    %147 = vst [vmem:[#allocation8] sm:$0xff] %v145
    %148 = vst [vmem:[#allocation8 + $0x8] sm:$0xff] %v146
    // Predicated region
    $region26: #{tpu_custom_call.1} parent=1 // pred_check
      _
    $region27: #{tpu_custom_call.1} parent=1 // pred_check_branch
      %150 = sbr.rel (0) target = $region29
    $region28: #{tpu_custom_call.1} parent=1 // pred_region
      %152 = vsyncadd [#allocation4], 0
      %s153 = sshll.u32 [#allocation8], 4
      %s154 = int_to_ptr.vmem [resolvable:$true] %s153
      %s155 = sshll.u32 %s3, 4
      %s156 = int_to_ptr.hbm [resolvable:$true] %s155
      %161 = dma.vmem_to_hbm [thread:$0]  %s154, 256, %s156, [#allocation4], 128, 128, 8
    $region29: #{tpu_custom_call.1} parent=1 // pred_fallthru
      _
    // Predicated region
    $region30: #{tpu_custom_call.1} parent=1 // pred_check
      _
    $region31: #{tpu_custom_call.1} parent=1 // pred_check_branch
      %163 = sbr.rel (0) target = $region33
    $region32: #{tpu_custom_call.1} parent=1 // pred_region
      %165 = dma.done [#allocation4], 256
    $region33: #{tpu_custom_call.1} parent=1 // pred_fallthru
      _
    %166 = vsyncpa [#allocation3], 1
    %167 = vsyncpa [#allocation6], 1
    %168 = vsyncpa [#allocation4], 1

</llo_original>
